<compile_context>
chip_gen: v5e
topology: v5e:2x2
jax: 0.10.0
libtpu: 0.0.40
codegen_flags: <defaults>
</compile_context>

<pallas_src>
import math

import jax
import jax.numpy as jnp
from jax.experimental import pallas as pl
from jax.experimental.pallas import tpu as pltpu


# ---------------------------------------------------------------------------
# Kernel body
# ---------------------------------------------------------------------------
def _make_swap_kernel(ax0: int, ax1: int):
    def kernel(x_ref, o_ref):
        # Pure data movement: relayout of the block.  When the swapped block
        # dims are 1 this degenerates to a free copy (swap done purely in the
        # output index_map).
        o_ref[...] = jnp.swapaxes(x_ref[...], ax0, ax1)
    return kernel


# ---------------------------------------------------------------------------
# Hardware-aware sizing helpers
# ---------------------------------------------------------------------------
def _physical_vmem_bytes() -> int:
    try:
        info = pltpu.get_tpu_info()
        cap = getattr(info, "vmem_capacity_bytes", None)
        if cap:
            return int(cap)
    except Exception:
        pass
    return 64 << 20  # conservative default (v7x: 64 MiB per TensorCore)


def _block_budget_bytes() -> int:
    # in + out blocks, double-buffered, plus ~one block of Mosaic relayout
    # scratch ~= 5 blocks; keep that under ~40% of physical VMEM.
    # -> ~10 MiB blocks on v5e/v6e (128 MiB VMEM), ~5 MiB on v7x (64 MiB/TC).
    return max(1 << 20, _physical_vmem_bytes() // 12)


def _largest_aligned_divisor(dim: int, align: int, cap: int) -> int:
    """Largest d with dim % d == 0, d % align == 0 and d <= cap (0 if none)."""
    best = 0
    i = 1
    while i * i <= dim:
        if dim % i == 0:
            for d in (i, dim // i):
                if d <= cap and d % align == 0 and d > best:
                    best = d
        i += 1
    return best


def _pick_tile(dim: int, align: int, cap: int) -> int:
    """Block size for one axis: <= cap elements when possible, divides dim,
    and is a multiple of `align` or equal to the full dim (last-two-dims rule)."""
    cap = max(1, cap)
    if dim <= cap:
        return dim                       # full extent: always legal
    d = _largest_aligned_divisor(dim, max(1, align), cap)
    if d > 0:
        return d
    if align > 1 and dim % align == 0:
        return align                     # mandatory minimum for constrained axes
    return dim                           # forced full extent (legality > budget)


def _min_blocks(shape, aligns):
    mins = []
    for dim, al in zip(shape, aligns):
        if al <= 1:
            mins.append(1)
        elif dim % al == 0:
            mins.append(min(al, dim))
        else:
            mins.append(dim)             # must fall back to full extent
    return mins


def _pad_shape_for_alignment(shape, aligns, itemsize, budget):
    """Guard the full-extent fallback: pad non-divisible constrained axes
    that would otherwise blow the VMEM budget."""
    mins = _min_blocks(shape, aligns)
    padded = list(shape)
    for i, (dim, al) in enumerate(zip(shape, aligns)):
        if al > 1 and dim % al != 0:
            others = 1
            for j, m in enumerate(mins):
                if j != i:
                    others *= m
            if dim * others * itemsize > budget:
                padded[i] = -(-dim // al) * al     # round up to a multiple of align
    return tuple(padded)


def _choose_block(shape, aligns, order, itemsize, budget):
    block = _min_blocks(shape, aligns)
    for i in order:
        others = 1
        for j, b in enumerate(block):
            if j != i:
                others *= b
        cap = budget // max(1, itemsize * others)
        block[i] = max(block[i], _pick_tile(shape[i], aligns[i], cap))
    return block


def _compiler_params(num_grid_axes, in_block_bytes, out_block_bytes, in_buffers):
    phys = _physical_vmem_bytes()
    # in blocks (possibly triple-buffered) + double-buffered out blocks + one
    # extra block of headroom for Mosaic's relayout / transpose scratch.
    est = (in_buffers * in_block_bytes + 2 * out_block_bytes
           + max(in_block_bytes, out_block_bytes))
    vmem_limit = None
    if est > (10 << 20):  # v5e's default scoped limit is 16 MiB -> raise early
        cap = min(int(phys * 0.85), 96 << 20)      # ~54 MiB cap on v7x
        vmem_limit = int(min(max(est + (4 << 20), 32 << 20), cap))
    sem = ("parallel",) * num_grid_axes if num_grid_axes else None
    return pltpu.CompilerParams(dimension_semantics=sem,
                                vmem_limit_bytes=vmem_limit)


def _input_spec(block, index_map, buffer_count):
    if buffer_count > 2:
        try:
            return pl.BlockSpec(block, index_map,
                                pipeline_mode=pl.Buffered(buffer_count))
        except Exception:
            pass  # older jax without pipeline_mode: plain double-buffering
    return pl.BlockSpec(block, index_map)


# ---------------------------------------------------------------------------
# Canonical-form swap via pallas_call
# ---------------------------------------------------------------------------
def _canonical_swap(xc: jax.Array, pa: int, qa: int) -> jax.Array:
    """jnp.swapaxes(xc, pa, qa) where xc is the canonical (merged-axes) array."""
    cshape = xc.shape
    rank = len(cshape)
    itemsize = jnp.dtype(xc.dtype).itemsize
    pack = max(1, 4 // itemsize)         # sublane packing: f32->1, bf16->2, i8->4
    sub_align = 8 * pack

    def swapped(i):
        return qa if i == pa else (pa if i == qa else i)

    # Axes whose block dim lands in a lane / sublane position of the input OR
    # output block (the output block is the input block with pa/qa swapped).
    lane_axes = {rank - 1, swapped(rank - 1)}
    sub_axes = {rank - 2, swapped(rank - 2)} if rank >= 2 else set()

    aligns = []
    for i in range(rank):
        if i in lane_axes:
            aligns.append(128)
        elif i in sub_axes:
            aligns.append(sub_align)
        else:
            aligns.append(1)

    budget = _block_budget_bytes()

    # Pad non-divisible constrained axes that would otherwise force an
    # oversized full-extent block; slice the result back afterwards.
    work_shape = _pad_shape_for_alignment(cshape, aligns, itemsize, budget)
    needs_pad = work_shape != cshape
    if needs_pad:
        xc = jnp.pad(xc, [(0, p - d) for p, d in zip(work_shape, cshape)])

    # Tile priority: input lane, input sublane, their swapped partners
    # (= output lane / sublane), then remaining axes innermost-first.
    order = []
    for i in (rank - 1, rank - 2, swapped(rank - 1), swapped(rank - 2)):
        if 0 <= i < rank and i not in order:
            order.append(i)
    for i in reversed(range(rank)):
        if i not in order:
            order.append(i)

    block = _choose_block(work_shape, aligns, order, itemsize, budget)
    grid = tuple(d // b for d, b in zip(work_shape, block))
    num_steps = math.prod(grid)

    out_work_shape = list(work_shape)
    out_work_shape[pa], out_work_shape[qa] = out_work_shape[qa], out_work_shape[pa]
    out_block = list(block)
    out_block[pa], out_block[qa] = out_block[qa], out_block[pa]

    def in_map(*g):
        return g

    def out_map(*g):
        g = list(g)
        g[pa], g[qa] = g[qa], g[pa]
        return tuple(g)

    block_bytes = math.prod(block) * itemsize
    # Small blocks + many steps -> expose DMA latency; add a third input buffer.
    in_buffers = 3 if (num_steps > 4 and block_bytes < (512 << 10)) else 2

    cost = pl.CostEstimate(flops=0, transcendentals=0,
                           bytes_accessed=2 * math.prod(work_shape) * itemsize)

    yc = pl.pallas_call(
        _make_swap_kernel(pa, qa),
        out_shape=jax.ShapeDtypeStruct(tuple(out_work_shape), xc.dtype),
        grid=grid,
        in_specs=[_input_spec(tuple(block), in_map, in_buffers)],
        out_specs=pl.BlockSpec(tuple(out_block), out_map),
        compiler_params=_compiler_params(len(grid), block_bytes, block_bytes,
                                         in_buffers),
        cost_estimate=cost,
    )(xc)

    if needs_pad:
        true_out = list(cshape)
        true_out[pa], true_out[qa] = true_out[qa], true_out[pa]
        yc = yc[tuple(slice(0, s) for s in true_out)]
    return yc


# ---------------------------------------------------------------------------
# Public op + module mirror
# ---------------------------------------------------------------------------
def transpose_layer(x: jax.Array, dim0: int, dim1: int) -> jax.Array:
    """Pallas-TPU equivalent of torch.Tensor.transpose(dim0, dim1)."""
    nd = x.ndim
    if nd == 0:
        return x
    d0 = dim0 % nd
    d1 = dim1 % nd
    if d0 == d1:
        return x                        # identity: no HBM round-trip
    if d0 > d1:
        d0, d1 = d1, d0

    in_shape = x.shape
    out_shape = list(in_shape)
    out_shape[d0], out_shape[d1] = out_shape[d1], out_shape[d0]
    out_shape = tuple(out_shape)

    # Trivial relabels: empty tensor or a size-1 swapped axis -> pure reshape.
    if x.size == 0 or in_shape[d0] == 1 or in_shape[d1] == 1:
        return jnp.reshape(x, out_shape)

    # Canonical form: merge every contiguous run of untouched axes
    # (lead / mid / trail), drop size-1 groups.
    lead = math.prod(in_shape[:d0]) if d0 > 0 else 1
    mid = math.prod(in_shape[d0 + 1:d1]) if d1 > d0 + 1 else 1
    trail = math.prod(in_shape[d1 + 1:]) if d1 < nd - 1 else 1
    p, q = in_shape[d0], in_shape[d1]

    cshape = []
    if lead > 1:
        cshape.append(lead)
    pa = len(cshape)
    cshape.append(p)
    if mid > 1:
        cshape.append(mid)
    qa = len(cshape)
    cshape.append(q)
    if trail > 1:
        cshape.append(trail)

    xc = jnp.reshape(x, tuple(cshape))
    yc = _canonical_swap(xc, pa, qa)
    return jnp.reshape(yc, out_shape)


class TransposeLayer:
    """Mirror of the PyTorch module: stateless, stores the two dims."""

    def __init__(self, dim0: int, dim1: int):
        self.dim0 = dim0
        self.dim1 = dim1

    def __call__(self, x: jax.Array) -> jax.Array:
        return transpose_layer(x, self.dim0, self.dim1)


if __name__ == "__main__":
    key = jax.random.PRNGKey(0)
    # NCHW-like input, small shapes.
    x = jax.random.normal(key, (2, 4, 16, 16), dtype=jnp.float32)

    # Every distinct axis pair exercises a different canonical layout
    # (lane-untouched copy-ish, last-two transpose, mixed lane swap, ...).
    for (a, b) in [(1, 2), (2, 3), (0, 1), (1, 3), (0, 2), (0, 3)]:
        out = jax.block_until_ready(TransposeLayer(a, b)(x))
        ref = jnp.swapaxes(x, a, b)
        assert out.shape == ref.shape and out.dtype == ref.dtype, (a, b)
        assert bool(jnp.array_equal(out, ref)), (a, b)

    # Negative dims (torch semantics).
    out_neg = jax.block_until_ready(TransposeLayer(-2, -1)(x))
    assert bool(jnp.array_equal(out_neg, jnp.swapaxes(x, 2, 3)))

    # Sub-32-bit dtype exercises packing-aware sublane alignment.
    xb = x.astype(jnp.bfloat16)
    outb = jax.block_until_ready(TransposeLayer(1, 2)(xb))
    assert bool(jnp.array_equal(outb, jnp.swapaxes(xb, 1, 2)))

    # Identity case short-circuits (no kernel launch).
    assert TransposeLayer(1, 1)(x) is x

    print("KERNEL_OK")
</pallas_src>

<mosaic_0001>
module attributes {stable_mosaic.version = 11 : i64} {
  func.func @kernel(%arg0: i32, %arg1: i32, %arg2: i32, %arg3: i32, %arg4: memref<2x4x16x16xf32, #tpu.memory_space<vmem>>, %arg5: memref<2x16x4x16xf32, #tpu.memory_space<vmem>>) attributes {dimension_semantics = [#tpu.dimension_semantics<parallel>, #tpu.dimension_semantics<parallel>, #tpu.dimension_semantics<parallel>, #tpu.dimension_semantics<parallel>], iteration_bounds = array<i64: 1, 1, 1, 1>, scalar_prefetch = 0 : i64, scratch_operands = 0 : i64, tpu.core_type = #tpu.core_type<tc>, window_params = [{transform_indices = @transform_0, window_bounds = array<i64: 2, 4, 16, 16>}, {transform_indices = @transform_1, window_bounds = array<i64: 2, 16, 4, 16>}]} {
    %c0 = arith.constant 0 : index
    %c0_0 = arith.constant 0 : index
    %c0_1 = arith.constant 0 : index
    %c0_2 = arith.constant 0 : index
    %0 = vector.load %arg4[%c0, %c0_0, %c0_1, %c0_2] : memref<2x4x16x16xf32, #tpu.memory_space<vmem>>, vector<2x4x16x16xf32>
    %1 = tpu.transpose %0, [0, 2, 1, 3] : vector<2x4x16x16xf32> -> vector<2x16x4x16xf32>
    %c0_3 = arith.constant 0 : index
    %c0_4 = arith.constant 0 : index
    %c0_5 = arith.constant 0 : index
    %c0_6 = arith.constant 0 : index
    %2 = vector.load %arg5[%c0_3, %c0_4, %c0_5, %c0_6] : memref<2x16x4x16xf32, #tpu.memory_space<vmem>>, vector<2x16x4x16xf32>
    tpu.vector_store %arg5[%c0_3, %c0_4, %c0_5, %c0_6], %1 {strides = array<i32>} : memref<2x16x4x16xf32, #tpu.memory_space<vmem>>, vector<2x16x4x16xf32>,
    return
  }
  func.func @transform_0(%arg0: i32, %arg1: i32, %arg2: i32, %arg3: i32) -> (i32, i32, i32, i32) {
    %c0_i32 = arith.constant 0 : i32
    return %arg0, %arg1, %arg2, %arg3 : i32, i32, i32, i32
  }
  func.func @transform_1(%arg0: i32, %arg1: i32, %arg2: i32, %arg3: i32) -> (i32, i32, i32, i32) {
    %c0_i32 = arith.constant 0 : i32
    return %arg0, %arg2, %arg1, %arg3 : i32, i32, i32, i32
  }
}

</mosaic_0001>

<llo_original>
// kernel: tpu_custom_call.1
$region0: #{tpu_custom_call.1}
  #allocation0 [shape = 'u32[]', space=smem, size = 0x4, offset = 0x4, fixed_abs, tag = 'smem constant byte address 0x4 - core index']
  #allocation1 [shape = 'u32[72,128]{1,0:T(1,128)}', space=vmem, size = 0x9000, scoped, tag = 'internal scratch']
  %s0 = inlined_call_operand.hbm [shape: f32[2,4,16,16], index: 0, kind: input, shape index: {}]
  %s1 = inlined_call_operand.hbm [shape: f32[2,16,4,16], index: 1, kind: output, shape index: {}]
  %s2 = sld [smem:[#allocation0]]
  $region18: #{tpu_custom_call.1} parent=0
    _
  %s4 = ssub.s32 1, %s2
  %s5 = scalar_select 0, %s4, %s2
  $region1: #{tpu_custom_call.1} parent=0
    #allocation2 [shape = 'u8[65536]{0}', space=vmem, size = 0x10000, scoped, tag = 'input window, operand 0, single buffered']
    #allocation3 [shape = 's32[1]{0}', space=sflag, size = 0x4, scoped, tag = 'scoped memory for tpu_custom_call.1']
    #allocation4 [shape = 's32[1]{0}', space=sflag, size = 0x4, scoped, tag = 'scoped memory for tpu_custom_call.1']
    #allocation5 [shape = 'u8[65536]{0}', space=vmem, size = 0x10000, scoped, tag = 'output window, operand 0, single buffered']
    %6 = vsyncpa [#allocation3], 0
    %7 = vsyncpa [#allocation4], 0
    // Predicated region
    $region2: #{tpu_custom_call.1} parent=1 // pred_check
      _
    $region3: #{tpu_custom_call.1} parent=1 // pred_check_branch
      %9 = sbr.rel (0) target = $region5
    $region4: #{tpu_custom_call.1} parent=1 // pred_region
      %11 = vsyncadd [#allocation3], 0
      %s12 = sshll.u32 %s0, 4
      %s13 = int_to_ptr.hbm [resolvable:$true] %s12
      %s14 = sshll.u32 [#allocation2], 4
      %s15 = int_to_ptr.vmem [resolvable:$true] %s14
      %20 = dma.hbm_to_vmem [thread:$0]  %s13, 2048, %s15, [#allocation3], 128, 128, 8
    $region5: #{tpu_custom_call.1} parent=1 // pred_fallthru
      _
    // Predicated region
    $region6: #{tpu_custom_call.1} parent=1 // pred_check
      _
    $region7: #{tpu_custom_call.1} parent=1 // pred_check_branch
      %22 = sbr.rel (0) target = $region9
    $region8: #{tpu_custom_call.1} parent=1 // pred_region
      %24 = dma.done [#allocation3], 2048
    $region9: #{tpu_custom_call.1} parent=1 // pred_fallthru
      _
    %v25 = vld [vmem:[#allocation2] sm:$0xff]
    %v26 = vld [vmem:[#allocation2 + $0x8] sm:$0xff]
    %v27 = vld [vmem:[#allocation2 + $0x10] sm:$0xff]
    %v28 = vld [vmem:[#allocation2 + $0x18] sm:$0xff]
    %v29 = vld [vmem:[#allocation2 + $0x20] sm:$0xff]
    %v30 = vld [vmem:[#allocation2 + $0x28] sm:$0xff]
    %v31 = vld [vmem:[#allocation2 + $0x30] sm:$0xff]
    %v32 = vld [vmem:[#allocation2 + $0x38] sm:$0xff]
    %v33 = vld [vmem:[#allocation2 + $0x40] sm:$0xff]
    %v34 = vld [vmem:[#allocation2 + $0x48] sm:$0xff]
    %v35 = vld [vmem:[#allocation2 + $0x50] sm:$0xff]
    %v36 = vld [vmem:[#allocation2 + $0x58] sm:$0xff]
    %v37 = vld [vmem:[#allocation2 + $0x60] sm:$0xff]
    %v38 = vld [vmem:[#allocation2 + $0x68] sm:$0xff]
    %v39 = vld [vmem:[#allocation2 + $0x70] sm:$0xff]
    %v40 = vld [vmem:[#allocation2 + $0x78] sm:$0xff]
    %v41 = vrot.slane %v29, 4
    %vm42 = vcmask 1047556
    %v43 = vsel %vm42, %v41, %v25
    %v44 = vrot.slane %v25, 4
    %v45 = vsel %vm42, %v29, %v44
    %v47 = vunpack.c.l.s4 1983009808
    %v48 = vunpack.c.0.s8 %v47
    %v49 = vperm.slane %v43, %v48
    %v51 = vunpack.c.l.s4 1983009808
    %v52 = vunpack.c.0.s8 %v51
    %v53 = vperm.slane %v45, %v52
    %v54 = vrot.slane %v31, 4
    %v55 = vsel %vm42, %v54, %v27
    %v56 = vrot.slane %v27, 4
    %v57 = vsel %vm42, %v31, %v56
    %v59 = vunpack.c.l.s4 1983009808
    %v60 = vunpack.c.0.s8 %v59
    %v61 = vperm.slane %v55, %v60
    %v63 = vunpack.c.l.s4 1983009808
    %v64 = vunpack.c.0.s8 %v63
    %v65 = vperm.slane %v57, %v64
    %v66 = vrot.slane %v61, 4
    %v67 = vsel %vm42, %v66, %v49
    %v68 = vrot.slane %v49, 4
    %v69 = vsel %vm42, %v61, %v68
    %v71 = vunpack.c.l.s4 1934713408
    %v72 = vunpack.c.0.s8 %v71
    %v73 = vperm.slane %v67, %v72
    %v75 = vunpack.c.l.s4 1934713408
    %v76 = vunpack.c.0.s8 %v75
    %v77 = vperm.slane %v69, %v76
    %v78 = vrot.slane %v65, 4
    %v79 = vsel %vm42, %v78, %v53
    %v80 = vrot.slane %v53, 4
    %v81 = vsel %vm42, %v65, %v80
    %v83 = vunpack.c.l.s4 1934713408
    %v84 = vunpack.c.0.s8 %v83
    %v85 = vperm.slane %v79, %v84
    %v87 = vunpack.c.l.s4 1934713408
    %v88 = vunpack.c.0.s8 %v87
    %v89 = vperm.slane %v81, %v88
    %v90 = vrot.slane %v73, 4
    %v91 = vsel %vm42, 0.0, %v90
    %v92 = vrot.slane %v77, 4
    %v93 = vsel %vm42, 0.0, %v92
    %v94 = vrot.slane %v85, 4
    %v95 = vsel %vm42, 0.0, %v94
    %v96 = vrot.slane %v89, 4
    %v97 = vsel %vm42, 0.0, %v96
    %v98 = vrot.slane %v30, 4
    %v99 = vsel %vm42, %v98, %v26
    %v100 = vrot.slane %v26, 4
    %v101 = vsel %vm42, %v30, %v100
    %v103 = vunpack.c.l.s4 1983009808
    %v104 = vunpack.c.0.s8 %v103
    %v105 = vperm.slane %v99, %v104
    %v107 = vunpack.c.l.s4 1983009808
    %v108 = vunpack.c.0.s8 %v107
    %v109 = vperm.slane %v101, %v108
    %v110 = vrot.slane %v32, 4
    %v111 = vsel %vm42, %v110, %v28
    %v112 = vrot.slane %v28, 4
    %v113 = vsel %vm42, %v32, %v112
    %v115 = vunpack.c.l.s4 1983009808
    %v116 = vunpack.c.0.s8 %v115
    %v117 = vperm.slane %v111, %v116
    %v119 = vunpack.c.l.s4 1983009808
    %v120 = vunpack.c.0.s8 %v119
    %v121 = vperm.slane %v113, %v120
    %v122 = vrot.slane %v117, 4
    %v123 = vsel %vm42, %v122, %v105
    %v124 = vrot.slane %v105, 4
    %v125 = vsel %vm42, %v117, %v124
    %v127 = vunpack.c.l.s4 1934713408
    %v128 = vunpack.c.0.s8 %v127
    %v129 = vperm.slane %v123, %v128
    %v131 = vunpack.c.l.s4 1934713408
    %v132 = vunpack.c.0.s8 %v131
    %v133 = vperm.slane %v125, %v132
    %v134 = vrot.slane %v121, 4
    %v135 = vsel %vm42, %v134, %v109
    %v136 = vrot.slane %v109, 4
    %v137 = vsel %vm42, %v121, %v136
    %v139 = vunpack.c.l.s4 1934713408
    %v140 = vunpack.c.0.s8 %v139
    %v141 = vperm.slane %v135, %v140
    %v143 = vunpack.c.l.s4 1934713408
    %v144 = vunpack.c.0.s8 %v143
    %v145 = vperm.slane %v137, %v144
    %v146 = vrot.slane %v129, 4
    %v147 = vsel %vm42, 0.0, %v146
    %v148 = vrot.slane %v133, 4
    %v149 = vsel %vm42, 0.0, %v148
    %v150 = vrot.slane %v141, 4
    %v151 = vsel %vm42, 0.0, %v150
    %v152 = vrot.slane %v145, 4
    %v153 = vsel %vm42, 0.0, %v152
    %v154 = vrot.slane %v37, 4
    %v155 = vsel %vm42, %v154, %v33
    %v156 = vrot.slane %v33, 4
    %v157 = vsel %vm42, %v37, %v156
    %v159 = vunpack.c.l.s4 1983009808
    %v160 = vunpack.c.0.s8 %v159
    %v161 = vperm.slane %v155, %v160
    %v163 = vunpack.c.l.s4 1983009808
    %v164 = vunpack.c.0.s8 %v163
    %v165 = vperm.slane %v157, %v164
    %v166 = vrot.slane %v39, 4
    %v167 = vsel %vm42, %v166, %v35
    %v168 = vrot.slane %v35, 4
    %v169 = vsel %vm42, %v39, %v168
    %v171 = vunpack.c.l.s4 1983009808
    %v172 = vunpack.c.0.s8 %v171
    %v173 = vperm.slane %v167, %v172
    %v175 = vunpack.c.l.s4 1983009808
    %v176 = vunpack.c.0.s8 %v175
    %v177 = vperm.slane %v169, %v176
    %v178 = vrot.slane %v173, 4
    %v179 = vsel %vm42, %v178, %v161
    %v180 = vrot.slane %v161, 4
    %v181 = vsel %vm42, %v173, %v180
    %v183 = vunpack.c.l.s4 1934713408
    %v184 = vunpack.c.0.s8 %v183
    %v185 = vperm.slane %v179, %v184
    %v187 = vunpack.c.l.s4 1934713408
    %v188 = vunpack.c.0.s8 %v187
    %v189 = vperm.slane %v181, %v188
    %v190 = vrot.slane %v177, 4
    %v191 = vsel %vm42, %v190, %v165
    %v192 = vrot.slane %v165, 4
    %v193 = vsel %vm42, %v177, %v192
    %v195 = vunpack.c.l.s4 1934713408
    %v196 = vunpack.c.0.s8 %v195
    %v197 = vperm.slane %v191, %v196
    %v199 = vunpack.c.l.s4 1934713408
    %v200 = vunpack.c.0.s8 %v199
    %v201 = vperm.slane %v193, %v200
    %v202 = vrot.slane %v185, 4
    %v203 = vsel %vm42, 0.0, %v202
    %v204 = vrot.slane %v189, 4
    %v205 = vsel %vm42, 0.0, %v204
    %v206 = vrot.slane %v197, 4
    %v207 = vsel %vm42, 0.0, %v206
    %v208 = vrot.slane %v201, 4
    %v209 = vsel %vm42, 0.0, %v208
    %v210 = vrot.slane %v38, 4
    %v211 = vsel %vm42, %v210, %v34
    %v212 = vrot.slane %v34, 4
    %v213 = vsel %vm42, %v38, %v212
    %v215 = vunpack.c.l.s4 1983009808
    %v216 = vunpack.c.0.s8 %v215
    %v217 = vperm.slane %v211, %v216
    %v219 = vunpack.c.l.s4 1983009808
    %v220 = vunpack.c.0.s8 %v219
    %v221 = vperm.slane %v213, %v220
    %v222 = vrot.slane %v40, 4
    %v223 = vsel %vm42, %v222, %v36
    %v224 = vrot.slane %v36, 4
    %v225 = vsel %vm42, %v40, %v224
    %v227 = vunpack.c.l.s4 1983009808
    %v228 = vunpack.c.0.s8 %v227
    %v229 = vperm.slane %v223, %v228
    %v231 = vunpack.c.l.s4 1983009808
    %v232 = vunpack.c.0.s8 %v231
    %v233 = vperm.slane %v225, %v232
    %v234 = vrot.slane %v229, 4
    %v235 = vsel %vm42, %v234, %v217
    %v236 = vrot.slane %v217, 4
    %v237 = vsel %vm42, %v229, %v236
    %v239 = vunpack.c.l.s4 1934713408
    %v240 = vunpack.c.0.s8 %v239
    %v241 = vperm.slane %v235, %v240
    %v243 = vunpack.c.l.s4 1934713408
    %v244 = vunpack.c.0.s8 %v243
    %v245 = vperm.slane %v237, %v244
    %v246 = vrot.slane %v233, 4
    %v247 = vsel %vm42, %v246, %v221
    %v248 = vrot.slane %v221, 4
    %v249 = vsel %vm42, %v233, %v248
    %v251 = vunpack.c.l.s4 1934713408
    %v252 = vunpack.c.0.s8 %v251
    %v253 = vperm.slane %v247, %v252
    %v255 = vunpack.c.l.s4 1934713408
    %v256 = vunpack.c.0.s8 %v255
    %v257 = vperm.slane %v249, %v256
    %v258 = vrot.slane %v241, 4
    %v259 = vsel %vm42, 0.0, %v258
    %v260 = vrot.slane %v245, 4
    %v261 = vsel %vm42, 0.0, %v260
    %v262 = vrot.slane %v253, 4
    %v263 = vsel %vm42, 0.0, %v262
    %v264 = vrot.slane %v257, 4
    %v265 = vsel %vm42, 0.0, %v264
    %vm266 = vcmask 125952
    %267 = vst.msk [vmem:[#allocation5] sm:$0xf] %vm266, %v73
    %268 = vst.msk [vmem:[#allocation5 + $0x4] sm:$0xf] %vm266, %v91
    %269 = vst.msk [vmem:[#allocation5 + $0x8] sm:$0xf] %vm266, %v77
    %270 = vst.msk [vmem:[#allocation5 + $0xc] sm:$0xf] %vm266, %v93
    %271 = vst.msk [vmem:[#allocation5 + $0x10] sm:$0xf] %vm266, %v85
    %272 = vst.msk [vmem:[#allocation5 + $0x14] sm:$0xf] %vm266, %v95
    %273 = vst.msk [vmem:[#allocation5 + $0x18] sm:$0xf] %vm266, %v89
    %274 = vst.msk [vmem:[#allocation5 + $0x1c] sm:$0xf] %vm266, %v97
    %275 = vst.msk [vmem:[#allocation5 + $0x20] sm:$0xf] %vm266, %v129
    %276 = vst.msk [vmem:[#allocation5 + $0x24] sm:$0xf] %vm266, %v147
    %277 = vst.msk [vmem:[#allocation5 + $0x28] sm:$0xf] %vm266, %v133
    %278 = vst.msk [vmem:[#allocation5 + $0x2c] sm:$0xf] %vm266, %v149
    %279 = vst.msk [vmem:[#allocation5 + $0x30] sm:$0xf] %vm266, %v141
    %280 = vst.msk [vmem:[#allocation5 + $0x34] sm:$0xf] %vm266, %v151
    %281 = vst.msk [vmem:[#allocation5 + $0x38] sm:$0xf] %vm266, %v145
    %282 = vst.msk [vmem:[#allocation5 + $0x3c] sm:$0xf] %vm266, %v153
    %283 = vst.msk [vmem:[#allocation5 + $0x40] sm:$0xf] %vm266, %v185
    %284 = vst.msk [vmem:[#allocation5 + $0x44] sm:$0xf] %vm266, %v203
    %285 = vst.msk [vmem:[#allocation5 + $0x48] sm:$0xf] %vm266, %v189
    %286 = vst.msk [vmem:[#allocation5 + $0x4c] sm:$0xf] %vm266, %v205
    %287 = vst.msk [vmem:[#allocation5 + $0x50] sm:$0xf] %vm266, %v197
    %288 = vst.msk [vmem:[#allocation5 + $0x54] sm:$0xf] %vm266, %v207
    %289 = vst.msk [vmem:[#allocation5 + $0x58] sm:$0xf] %vm266, %v201
    %290 = vst.msk [vmem:[#allocation5 + $0x5c] sm:$0xf] %vm266, %v209
    %291 = vst.msk [vmem:[#allocation5 + $0x60] sm:$0xf] %vm266, %v241
    %292 = vst.msk [vmem:[#allocation5 + $0x64] sm:$0xf] %vm266, %v259
    %293 = vst.msk [vmem:[#allocation5 + $0x68] sm:$0xf] %vm266, %v245
    %294 = vst.msk [vmem:[#allocation5 + $0x6c] sm:$0xf] %vm266, %v261
    %295 = vst.msk [vmem:[#allocation5 + $0x70] sm:$0xf] %vm266, %v253
    %296 = vst.msk [vmem:[#allocation5 + $0x74] sm:$0xf] %vm266, %v263
    %297 = vst.msk [vmem:[#allocation5 + $0x78] sm:$0xf] %vm266, %v257
    %298 = vst.msk [vmem:[#allocation5 + $0x7c] sm:$0xf] %vm266, %v265
    // Predicated region
    $region10: #{tpu_custom_call.1} parent=1 // pred_check
      _
    $region11: #{tpu_custom_call.1} parent=1 // pred_check_branch
      %300 = sbr.rel (0) target = $region13
    $region12: #{tpu_custom_call.1} parent=1 // pred_region
      %302 = vsyncadd [#allocation4], 0
      %s303 = sshll.u32 [#allocation5], 4
      %s304 = int_to_ptr.vmem [resolvable:$true] %s303
      %s305 = sshll.u32 %s1, 4
      %s306 = int_to_ptr.hbm [resolvable:$true] %s305
      %311 = dma.vmem_to_hbm [thread:$0]  %s304, 2048, %s306, [#allocation4], 64, 64, 4
    $region13: #{tpu_custom_call.1} parent=1 // pred_fallthru
      _
    // Predicated region
    $region14: #{tpu_custom_call.1} parent=1 // pred_check
      _
    $region15: #{tpu_custom_call.1} parent=1 // pred_check_branch
      %313 = sbr.rel (0) target = $region17
    $region16: #{tpu_custom_call.1} parent=1 // pred_region
      %315 = dma.done [#allocation4], 2048
    $region17: #{tpu_custom_call.1} parent=1 // pred_fallthru
      _
    %316 = vsyncpa [#allocation3], 1
    %317 = vsyncpa [#allocation4], 1

</llo_original>
